<compile_context>
chip_gen: v6e
topology: v6e:2x2x1
jax: 0.10.0
libtpu: 0.0.40
codegen_flags: <defaults>
</compile_context>

<pallas_src>
import jax
import jax.numpy as jnp
from jax.experimental import pallas as pl
from jax.experimental.pallas import tpu as pltpu


def _round_up(x: int, m: int) -> int:
    return ((x + m - 1) // m) * m


def _patch_embed_kernel(x_ref, w_ref, b_ref, o_ref):
    # x_ref: (TM, K), w_ref: (K, TN), b_ref: (1, TN), o_ref: (TM, TN)
    acc = jnp.dot(x_ref[...], w_ref[...], preferred_element_type=jnp.float32)
    o_ref[...] = (acc + b_ref[...].astype(jnp.float32)).astype(o_ref.dtype)


def patch_embed_matmul(patches, weight, bias):
    """patches: (M, K), weight: (K, E), bias: (E,) -> (M, E)."""
    M, K = patches.shape
    Kw, E = weight.shape
    assert Kw == K
    dtype = patches.dtype
    itemsize = jnp.dtype(dtype).itemsize

    # --- pad only the small params so the output lane dim is 128-dense ------
    E_pad = _round_up(E, 128)
    if E_pad != E:
        weight = jnp.pad(weight, ((0, 0), (0, E_pad - E)))
        bias = jnp.pad(bias, (0, E_pad - E))
    bias2d = bias.reshape(1, E_pad)

    # --- tile sizes (MXU-friendly, VMEM-safe incl. v7x 64 MiB) --------------
    # Full-M block when small (always legal); otherwise 512-row tiles, ragged
    # edge block clipped by the cdiv grid.  K is a full-extent block (legal
    # even when K % 128 != 0), so no accumulator / reduction axis is needed.
    TM = M if M <= 512 else 512
    TN = min(512, E_pad)                 # lane-dense, multiple of 128
    grid_m = pl.cdiv(M, TM)
    grid_n = E_pad // TN

    # double-buffered patch/weight/bias/output tiles, plus headroom
    K_eff = _round_up(K, 128)            # Mosaic pads layouts internally
    vmem_bytes = 2 * (TM * K_eff + K_eff * TN + TM * TN + TN) * max(itemsize, 4)
    vmem_limit = int(min(max(2 * vmem_bytes, 32 << 20), 64 << 20))

    out = pl.pallas_call(
        _patch_embed_kernel,
        out_shape=jax.ShapeDtypeStruct((M, E_pad), dtype),
        grid_spec=pltpu.PrefetchScalarGridSpec(
            num_scalar_prefetch=0,
            # grid = (E-tiles, M-tiles): M is innermost so the (K, TN) weight
            # block stays resident while patch tiles stream through.
            grid=(grid_n, grid_m),
            in_specs=[
                pl.BlockSpec((TM, K), lambda j, i: (i, 0)),   # patches
                pl.BlockSpec((K, TN), lambda j, i: (0, j)),   # weight (resident in M)
                pl.BlockSpec((1, TN), lambda j, i: (0, j)),   # bias
            ],
            out_specs=pl.BlockSpec((TM, TN), lambda j, i: (i, j)),
        ),
        compiler_params=pltpu.CompilerParams(
            dimension_semantics=("parallel", "parallel"),
            vmem_limit_bytes=vmem_limit,
        ),
        cost_estimate=pl.CostEstimate(
            flops=2 * M * K * E_pad,
            transcendentals=0,
            bytes_accessed=itemsize * (M * K + K * E_pad + M * E_pad),
        ),
    )(patches, weight, bias2d)

    if E_pad != E:
        out = out[:, :E]
    return out


def patch_embedding_forward(x, weight, bias, patch_size):
    """x: (B, C, H, W) NCHW, weight: (E, C, P, P), bias: (E,) -> (B, N, E)."""
    B, C, H, W = x.shape
    E = weight.shape[0]
    P = patch_size
    assert H % P == 0 and W % P == 0, "image size must be divisible by patch size"
    Hp, Wp = H // P, W // P
    N = Hp * Wp
    # patch extraction: each row flattened in (C, P, P) order to match the
    # PyTorch Conv2d weight layout (E, C, P, P).
    xp = x.reshape(B, C, Hp, P, Wp, P)
    xp = jnp.transpose(xp, (0, 2, 4, 1, 3, 5))          # (B, Hp, Wp, C, P, P)
    patches = xp.reshape(B * N, C * P * P)              # (M, K)
    w2d = weight.reshape(E, C * P * P).T                # (K, E)
    out = patch_embed_matmul(patches, w2d, bias)        # (M, E)
    return out.reshape(B, N, E)


if __name__ == "__main__":
    # Small shapes consistent with the module: inc=4, patch_size=8, E=32.
    B, C, H, W = 2, 4, 16, 16
    P, E = 8, 32
    key = jax.random.PRNGKey(0)
    kx, kw, kb = jax.random.split(key, 3)

    x = jax.random.normal(kx, (B, C, H, W), dtype=jnp.float32)
    # deterministic param init (mimics PyTorch's uniform fan-in init scale)
    fan_in = C * P * P
    bound = 1.0 / (fan_in ** 0.5)
    weight = jax.random.uniform(kw, (E, C, P, P), dtype=jnp.float32,
                                minval=-bound, maxval=bound)
    bias = jax.random.uniform(kb, (E,), dtype=jnp.float32,
                              minval=-bound, maxval=bound)

    fwd = jax.jit(patch_embedding_forward, static_argnums=3)
    out = fwd(x, weight, bias, P)
    out = jax.block_until_ready(out)

    # reference check via XLA conv (same semantics as nn.Conv2d stride=kernel)
    ref = jax.lax.conv_general_dilated(
        x, weight, window_strides=(P, P), padding="VALID",
        dimension_numbers=("NCHW", "OIHW", "NCHW"))
    ref = ref + bias.reshape(1, E, 1, 1)
    ref = ref.reshape(B, E, -1).transpose(0, 2, 1)       # (B, N, E)
    assert out.shape == (B, (H // P) * (W // P), E)
    assert jnp.allclose(out, ref, atol=1e-4, rtol=1e-4)

    print("KERNEL_OK")
</pallas_src>

<mosaic_0001>
module attributes {stable_mosaic.version = 11 : i64} {
  func.func @_patch_embed_kernel(%arg0: i32, %arg1: i32, %arg2: memref<8x256xf32, #tpu.memory_space<vmem>>, %arg3: memref<256x128xf32, #tpu.memory_space<vmem>>, %arg4: memref<1x128xf32, #tpu.memory_space<vmem>>, %arg5: memref<8x128xf32, #tpu.memory_space<vmem>>) attributes {dimension_semantics = [#tpu.dimension_semantics<parallel>, #tpu.dimension_semantics<parallel>], iteration_bounds = array<i64: 1, 1>, scalar_prefetch = 0 : i64, scratch_operands = 0 : i64, tpu.core_type = #tpu.core_type<tc>, window_params = [{transform_indices = @transform_0, window_bounds = array<i64: 8, 256>}, {transform_indices = @transform_1, window_bounds = array<i64: 256, 128>}, {transform_indices = @transform_2, window_bounds = array<i64: 1, 128>}, {transform_indices = @transform_3, window_bounds = array<i64: 8, 128>}]} {
    %c0 = arith.constant 0 : index
    %c0_0 = arith.constant 0 : index
    %0 = vector.load %arg2[%c0, %c0_0] : memref<8x256xf32, #tpu.memory_space<vmem>>, vector<8x256xf32>
    %c0_1 = arith.constant 0 : index
    %c0_2 = arith.constant 0 : index
    %1 = vector.load %arg3[%c0_1, %c0_2] : memref<256x128xf32, #tpu.memory_space<vmem>>, vector<256x128xf32>
    %cst = arith.constant dense<0.000000e+00> : vector<8x128xf32>
    %2 = tpu.matmul %0, %1, %cst {dimension_numbers = #tpu.dot_dimension_numbers<[1], [0], [0], [1], [0, 0, 1, 1], [], []>} : vector<8x256xf32>, vector<256x128xf32>, vector<8x128xf32> -> vector<8x128xf32>
    %c0_3 = arith.constant 0 : index
    %c0_4 = arith.constant 0 : index
    %3 = vector.load %arg4[%c0_3, %c0_4] : memref<1x128xf32, #tpu.memory_space<vmem>>, vector<1x128xf32>
    %4 = vector.broadcast %3 : vector<1x128xf32> to vector<8x128xf32>
    %5 = arith.addf %2, %4 : vector<8x128xf32>
    %c0_5 = arith.constant 0 : index
    %c0_6 = arith.constant 0 : index
    %6 = vector.load %arg5[%c0_5, %c0_6] : memref<8x128xf32, #tpu.memory_space<vmem>>, vector<8x128xf32>
    tpu.vector_store %arg5[%c0_5, %c0_6], %5 {strides = array<i32>} : memref<8x128xf32, #tpu.memory_space<vmem>>, vector<8x128xf32>,
    return
  }
  func.func @transform_0(%arg0: i32, %arg1: i32) -> (i32, i32) {
    %c0_i32 = arith.constant 0 : i32
    %c0_i32_0 = arith.constant 0 : i32
    return %arg1, %c0_i32 : i32, i32
  }
  func.func @transform_1(%arg0: i32, %arg1: i32) -> (i32, i32) {
    %c0_i32 = arith.constant 0 : i32
    %c0_i32_0 = arith.constant 0 : i32
    return %c0_i32, %arg0 : i32, i32
  }
  func.func @transform_2(%arg0: i32, %arg1: i32) -> (i32, i32) {
    %c0_i32 = arith.constant 0 : i32
    %c0_i32_0 = arith.constant 0 : i32
    return %c0_i32, %arg0 : i32, i32
  }
  func.func @transform_3(%arg0: i32, %arg1: i32) -> (i32, i32) {
    %c0_i32 = arith.constant 0 : i32
    return %arg1, %arg0 : i32, i32
  }
}

</mosaic_0001>

<llo_original>
// kernel: patch_embedding_forward.1
$region0: #{patch_embedding_forward.1}
  #allocation0 [shape = 'u32[]', space=smem, size = 0x4, offset = 0x4, fixed_abs, tag = 'smem constant byte address 0x4 - core index']
  #allocation1 [shape = 'u32[144,128]{1,0:T(1,128)}', space=vmem, size = 0x12000, scoped, tag = 'internal scratch']
  %s0 = inlined_call_operand.vmem [shape: f32[8,256], index: 0, kind: input, shape index: {}]
  %s1 = inlined_call_operand.vmem [shape: f32[256,128], index: 1, kind: input, shape index: {}]
  %s2 = inlined_call_operand.vmem [shape: f32[1,128], index: 2, kind: input, shape index: {}]
  %s3 = inlined_call_operand.hbm [shape: f32[8,128], index: 3, kind: output, shape index: {}]
  %s4 = sld [smem:[#allocation0]]
  $region22: #{patch_embedding_forward.1} parent=0
    _
  %s6 = ssub.s32 1, %s4
  %s7 = scalar_select 0, %s6, %s4
  $region1: #{patch_embedding_forward.1} parent=0
    #allocation2 [shape = 'u8[4096]{0}', space=vmem, size = 0x1000, scoped, tag = 'output window, operand 0, single buffered']
    #allocation3 [shape = 's32[1]{0}', space=sflag, size = 0x4, scoped, tag = 'scoped memory for patch_embedding_forward.1']
    %8 = vsyncpa [#allocation3], 0
    // Predicated region
    $region2: #{patch_embedding_forward.1} parent=1 // pred_check
      _
    $region3: #{patch_embedding_forward.1} parent=1 // pred_check_branch
      %10 = sbr.rel (0) target = $region5
    $region4: #{patch_embedding_forward.1} parent=1 // pred_region
      _
    $region5: #{patch_embedding_forward.1} parent=1 // pred_fallthru
      _
    // Predicated region
    $region6: #{patch_embedding_forward.1} parent=1 // pred_check
      _
    $region7: #{patch_embedding_forward.1} parent=1 // pred_check_branch
      %12 = sbr.rel (0) target = $region9
    $region8: #{patch_embedding_forward.1} parent=1 // pred_region
      _
    $region9: #{patch_embedding_forward.1} parent=1 // pred_fallthru
      _
    // Predicated region
    $region10: #{patch_embedding_forward.1} parent=1 // pred_check
      _
    $region11: #{patch_embedding_forward.1} parent=1 // pred_check_branch
      %14 = sbr.rel (0) target = $region13
    $region12: #{patch_embedding_forward.1} parent=1 // pred_region
      _
    $region13: #{patch_embedding_forward.1} parent=1 // pred_fallthru
      _
    %v15 = vld [vmem:[%s0] sm:$0xff]
    %v16 = vld [vmem:[%s0 + $0x8] sm:$0xff]
    %v17 = vld [vmem:[%s1] sm:$0xff]
    %v18 = vld [vmem:[%s1 + $0x8] sm:$0xff]
    %v19 = vld [vmem:[%s1 + $0x10] sm:$0xff]
    %v20 = vld [vmem:[%s1 + $0x18] sm:$0xff]
    %v21 = vld [vmem:[%s1 + $0x20] sm:$0xff]
    %v22 = vld [vmem:[%s1 + $0x28] sm:$0xff]
    %v23 = vld [vmem:[%s1 + $0x30] sm:$0xff]
    %v24 = vld [vmem:[%s1 + $0x38] sm:$0xff]
    %v25 = vld [vmem:[%s1 + $0x40] sm:$0xff]
    %v26 = vld [vmem:[%s1 + $0x48] sm:$0xff]
    %v27 = vld [vmem:[%s1 + $0x50] sm:$0xff]
    %v28 = vld [vmem:[%s1 + $0x58] sm:$0xff]
    %v29 = vld [vmem:[%s1 + $0x60] sm:$0xff]
    %v30 = vld [vmem:[%s1 + $0x68] sm:$0xff]
    %v31 = vld [vmem:[%s1 + $0x70] sm:$0xff]
    %v32 = vld [vmem:[%s1 + $0x78] sm:$0xff]
    %v33 = vld [vmem:[%s1 + $0x80] sm:$0xff]
    %v34 = vld [vmem:[%s1 + $0x88] sm:$0xff]
    %v35 = vld [vmem:[%s1 + $0x90] sm:$0xff]
    %v36 = vld [vmem:[%s1 + $0x98] sm:$0xff]
    %v37 = vld [vmem:[%s1 + $0xa0] sm:$0xff]
    %v38 = vld [vmem:[%s1 + $0xa8] sm:$0xff]
    %v39 = vld [vmem:[%s1 + $0xb0] sm:$0xff]
    %v40 = vld [vmem:[%s1 + $0xb8] sm:$0xff]
    %v41 = vld [vmem:[%s1 + $0xc0] sm:$0xff]
    %v42 = vld [vmem:[%s1 + $0xc8] sm:$0xff]
    %v43 = vld [vmem:[%s1 + $0xd0] sm:$0xff]
    %v44 = vld [vmem:[%s1 + $0xd8] sm:$0xff]
    %v45 = vld [vmem:[%s1 + $0xe0] sm:$0xff]
    %v46 = vld [vmem:[%s1 + $0xe8] sm:$0xff]
    %v47 = vld [vmem:[%s1 + $0xf0] sm:$0xff]
    %v48 = vld [vmem:[%s1 + $0xf8] sm:$0xff]
    %v49 = vld [vmem:[%s2] sm:$0x1]
    %v51 = vlaneseq
    %v52 = vshrl.u32 %v51, 7
    %v53 = vsub.s32 0, %v52
    %v54 = vrot.slane %v49, %v53
    %56 = vmatprep.subr.mxu0 0.0
    %57 = vmatpush1.msra.mxu0 %v32
    %58 = vmatprep.subr.mxu0 0.0
    %59 = vmatpush1.msra.mxu0 %v31
    %60 = vmatprep.subr.mxu0 0.0
    %61 = vmatpush1.msra.mxu0 %v30
    %62 = vmatprep.subr.mxu0 0.0
    %63 = vmatpush1.msra.mxu0 %v29
    %64 = vmatprep.subr.mxu0 0.0
    %65 = vmatpush1.msra.mxu0 %v28
    %66 = vmatprep.subr.mxu0 0.0
    %67 = vmatpush1.msra.mxu0 %v27
    %68 = vmatprep.subr.mxu0 0.0
    %69 = vmatpush1.msra.mxu0 %v26
    %70 = vmatprep.subr.mxu0 0.0
    %71 = vmatpush1.msra.mxu0 %v25
    %72 = vmatprep.subr.mxu0 0.0
    %73 = vmatpush1.msra.mxu0 %v24
    %74 = vmatprep.subr.mxu0 0.0
    %75 = vmatpush1.msra.mxu0 %v23
    %76 = vmatprep.subr.mxu0 0.0
    %77 = vmatpush1.msra.mxu0 %v22
    %78 = vmatprep.subr.mxu0 0.0
    %79 = vmatpush1.msra.mxu0 %v21
    %80 = vmatprep.subr.mxu0 0.0
    %81 = vmatpush1.msra.mxu0 %v20
    %82 = vmatprep.subr.mxu0 0.0
    %83 = vmatpush1.msra.mxu0 %v19
    %84 = vmatprep.subr.mxu0 0.0
    %85 = vmatpush1.msra.mxu0 %v18
    %86 = vmatprep.subr.mxu0 0.0
    %87 = vmatpush1.msra.mxu0 %v17
    %88 = vmatprep.subr.mxu0 0.0
    %89 = vmatpush2.msra.mxu0 %v48
    %90 = vmatprep.subr.mxu0 0.0
    %91 = vmatpush2.msra.mxu0 %v47
    %92 = vmatprep.subr.mxu0 0.0
    %93 = vmatpush2.msra.mxu0 %v46
    %94 = vmatprep.subr.mxu0 0.0
    %95 = vmatpush2.msra.mxu0 %v45
    %96 = vmatprep.subr.mxu0 0.0
    %97 = vmatpush2.msra.mxu0 %v44
    %98 = vmatprep.subr.mxu0 0.0
    %99 = vmatpush2.msra.mxu0 %v43
    %100 = vmatprep.subr.mxu0 0.0
    %101 = vmatpush2.msra.mxu0 %v42
    %102 = vmatprep.subr.mxu0 0.0
    %103 = vmatpush2.msra.mxu0 %v41
    %104 = vmatprep.subr.mxu0 0.0
    %105 = vmatpush2.msra.mxu0 %v40
    %106 = vmatprep.subr.mxu0 0.0
    %107 = vmatpush2.msra.mxu0 %v39
    %108 = vmatprep.subr.mxu0 0.0
    %109 = vmatpush2.msra.mxu0 %v38
    %110 = vmatprep.subr.mxu0 0.0
    %111 = vmatpush2.msra.mxu0 %v37
    %112 = vmatprep.subr.mxu0 0.0
    %113 = vmatpush2.msra.mxu0 %v36
    %114 = vmatprep.subr.mxu0 0.0
    %115 = vmatpush2.msra.mxu0 %v35
    %116 = vmatprep.subr.mxu0 0.0
    %117 = vmatpush2.msra.mxu0 %v34
    %118 = vmatprep.subr.mxu0 0.0
    %119 = vmatpush2.msra.mxu0 %v33
    %120 = vmatprep.mubr.f32.mxu0 %v16
    %121 = vmatmul.mubr.f32.gmra.mxu0 %v15
    %v122 = vpop.f32.mrf.mxu0
    %v123 = vadd.f32 %v54, %v122
    %v124 = vpop.f32.mrf.mxu0
    %125 = vdwg.mxu0
    %126 = vst [vmem:[#allocation2] sm:$0xff] %v123
    // Predicated region
    $region14: #{patch_embedding_forward.1} parent=1 // pred_check
      _
    $region15: #{patch_embedding_forward.1} parent=1 // pred_check_branch
      %128 = sbr.rel (0) target = $region17
    $region16: #{patch_embedding_forward.1} parent=1 // pred_region
      %s130 = ssub.s32 128, 128
      %131 = vsyncadd [#allocation3], %s130
      %s133 = sshll.u32 [#allocation2], 4
      %s134 = int_to_ptr.vmem [resolvable:$true] %s133
      %136 = dma.vmem_to_hbm [thread:$0]  %s134, 128, %s3, [#allocation3]
    $region17: #{patch_embedding_forward.1} parent=1 // pred_fallthru
      _
    // Predicated region
    $region18: #{patch_embedding_forward.1} parent=1 // pred_check
      _
    $region19: #{patch_embedding_forward.1} parent=1 // pred_check_branch
      %138 = sbr.rel (0) target = $region21
    $region20: #{patch_embedding_forward.1} parent=1 // pred_region
      %139 = dma.done [#allocation3], 128
    $region21: #{patch_embedding_forward.1} parent=1 // pred_fallthru
      _
    %140 = vsyncpa [#allocation3], 1

</llo_original>
